<compile_context>
chip_gen: v7x
topology: tpu7x:2x2x1
jax: 0.10.0
libtpu: 0.0.40
codegen_flags: <defaults>
</compile_context>

<pallas_src>
import functools

import jax
import jax.numpy as jnp
from jax import lax
from jax.experimental import pallas as pl
from jax.experimental.pallas import tpu as pltpu

HIDDEN = 768   # hard-coded in the PyTorch module
LANES = 128    # TPU vreg lane width


def _round_up(n, m):
    return ((n + m - 1) // m) * m


# ----------------------------------------------------------------------------
# Kernel 1: fused layernorm (BERT stand-in epilogue) + bf16 cast + hidden2label
#           x[M, H] f32 -> LN -> bf16 -> MXU matmul -> feats[M, Lp=128] f32
# ----------------------------------------------------------------------------
def _ln_linear_kernel(x_ref, w_ref, b_ref, o_ref):
    x = x_ref[...]                                           # [TM, H] f32
    mu = jnp.mean(x, axis=-1, keepdims=True)
    var = jnp.mean((x - mu) * (x - mu), axis=-1, keepdims=True)
    xn = ((x - mu) * lax.rsqrt(var + 1e-12)).astype(jnp.bfloat16)
    o_ref[...] = (
        jnp.dot(xn, w_ref[...], preferred_element_type=jnp.float32) + b_ref[...]
    ).astype(o_ref.dtype)                                    # [TM, 128] f32 lane-dense


def _choose_m_tile(m, cap):
    tm = min(cap, m)
    # Keep >=2 grid steps where possible so the "parallel" axis can shard across both
    # v7x TensorCores (harmless single-core loop on v5e/v6e).
    if m > 8 and pl.cdiv(m, tm) < 2:
        tm = max(8, _round_up(pl.cdiv(m, 2), 8))
    return tm


def ln_hidden2label_pallas(x, w, b, *, tm_cap=2048):
    """x: [M, H] f32 (pre-layernorm), w: [H, L] f32, b: [L] f32 -> [M, Lp] f32."""
    M, H = x.shape
    L = w.shape[1]
    Lp = _round_up(L, LANES)                 # lane-dense output: pad labels to 128
    w_pad = jnp.zeros((H, Lp), jnp.bfloat16).at[:, :L].set(w.astype(jnp.bfloat16))
    b_pad = jnp.zeros((1, Lp), jnp.float32).at[:, :L].set(b.astype(jnp.float32))
    tm = _choose_m_tile(M, tm_cap)
    # VMEM @ tm=2048: x 6 MiB x2 (double-buffered) + out 1 MiB x2 + w ~0.4 MiB ~ 14.5 MiB.
    # Raise the scoped limit to 32 MiB so v5e's 16 MiB default is never the hazard;
    # 32 MiB is within physical VMEM on all generations (128/128/64 MiB).
    return pl.pallas_call(
        _ln_linear_kernel,
        out_shape=jax.ShapeDtypeStruct((M, Lp), jnp.float32),
        grid=(pl.cdiv(M, tm),),
        in_specs=[
            pl.BlockSpec((tm, H), lambda i: (i, 0)),
            pl.BlockSpec((H, Lp), lambda i: (0, 0)),
            pl.BlockSpec((1, Lp), lambda i: (0, 0)),
        ],
        out_specs=pl.BlockSpec((tm, Lp), lambda i: (i, 0)),
        compiler_params=pltpu.CompilerParams(
            dimension_semantics=("parallel",),
            vmem_limit_bytes=32 * 1024 * 1024,
        ),
    )(x, w_pad, b_pad)


# ----------------------------------------------------------------------------
# Kernel 2: Viterbi decode with batch on the LANE axis.
#   feats block: [L, T, tb]  (label leading/static, time on sublanes, batch on lanes)
#   transitions live in SMEM; log_delta is a tuple of L lane-dense [1, tb] rows.
# ----------------------------------------------------------------------------
def _viterbi_kernel(feats_ref, trans_ref, score_ref, path_ref, psi_ref,
                    *, start_label_id, num_labels):
    L = num_labels
    _, T, TB = feats_ref.shape

    # Hoist the L*L transition scalars (SMEM reads) out of the serial T loop.
    trans = [[trans_ref[j, i] for i in range(L)] for j in range(L)]

    neg = jnp.full((1, TB), -10000.0, jnp.float32)
    zero = jnp.zeros((1, TB), jnp.float32)
    log_delta0 = tuple(zero if j == start_label_id else neg for j in range(L))

    def fwd_body(t, log_delta):
        new_delta = []
        for j in range(L):                       # next label: static unroll (VPU only)
            best = log_delta[0] + trans[j][0]
            arg = jnp.zeros((1, TB), jnp.int32)
            for i in range(1, L):                # prev label: running max + argmax
                cand = log_delta[i] + trans[j][i]
                take = cand > best               # strict ">" => first maximal index on ties
                best = jnp.where(take, cand, best)
                arg = jnp.where(take, jnp.int32(i), arg)
            psi_ref[j, pl.ds(t, 1), :] = arg                       # small lane-dense store
            new_delta.append(best + feats_ref[j, pl.ds(t, 1), :])  # [1, TB]
        return tuple(new_delta)

    log_delta = lax.fori_loop(1, T, fwd_body, log_delta0)

    # Termination (no STOP transition added, matching the torch reference).
    best = log_delta[0]
    last = jnp.zeros((1, TB), jnp.int32)
    for j in range(1, L):
        take = log_delta[j] > best
        best = jnp.where(take, log_delta[j], best)
        last = jnp.where(take, jnp.int32(j), last)
    score_ref[...] = best                                          # [1, TB]
    path_ref[pl.ds(T - 1, 1), :] = last

    # Backtracking: path[t] = psi[t+1][path[t+1]] via a one-hot select over L rows;
    # each resolved pointer is stored straight into path_ref (no [TB, T] vreg carry).
    def bwd_body(i, ptr):
        t = T - 2 - i
        new_ptr = jnp.zeros((1, TB), jnp.int32)
        for j in range(L):
            row = psi_ref[j, pl.ds(t + 1, 1), :]                   # [1, TB] int32
            new_ptr = jnp.where(ptr == j, row, new_ptr)
        path_ref[pl.ds(t, 1), :] = new_ptr
        return new_ptr

    lax.fori_loop(0, T - 1, bwd_body, last)


def viterbi_pallas(feats_v, transitions, start_label_id, *, tb_cap=128):
    """feats_v: [L, T, B] f32, transitions: [L, L] f32 -> (score [B], path [B, T] i32)."""
    L, T, B = feats_v.shape
    # Lane-axis blocks must be a multiple of 128 or the full batch; for B > 128 the
    # grid gets >=2 "parallel" steps (feeds both v7x TensorCores).
    tb = B if B <= tb_cap else tb_cap
    kernel = functools.partial(_viterbi_kernel, start_label_id=start_label_id,
                               num_labels=L)
    score, path = pl.pallas_call(
        kernel,
        out_shape=(
            jax.ShapeDtypeStruct((1, B), jnp.float32),
            jax.ShapeDtypeStruct((T, B), jnp.int32),
        ),
        grid=(pl.cdiv(B, tb),),
        in_specs=[
            pl.BlockSpec((L, T, tb), lambda i: (0, 0, i)),
            pl.BlockSpec(memory_space=pltpu.MemorySpace.SMEM),     # whole [L, L] table
        ],
        out_specs=(
            pl.BlockSpec((1, tb), lambda i: (0, i)),
            pl.BlockSpec((T, tb), lambda i: (0, i)),
        ),
        scratch_shapes=[pltpu.VMEM((L, T, tb), jnp.int32)],        # psi backpointers
        compiler_params=pltpu.CompilerParams(dimension_semantics=("parallel",)),
    )(feats_v, transitions)
    return score.reshape(B), path.T                                # path -> [B, T]


# ----------------------------------------------------------------------------
# Parameter init (deterministic, mirrors __init__ shapes) + forward glue
# ----------------------------------------------------------------------------
def init_params(key, vocab_size, max_seq, num_labels, start_label_id, stop_label_id):
    ks = jax.random.split(key, 5)
    # xavier_uniform for hidden2label
    bound = (6.0 / (HIDDEN + num_labels)) ** 0.5
    w = jax.random.uniform(ks[0], (HIDDEN, num_labels), jnp.float32, -bound, bound)
    b = jnp.zeros((num_labels,), jnp.float32)
    # CRF transitions ~ randn, with start row / stop column forced to -10000
    trans = jax.random.normal(ks[1], (num_labels, num_labels), jnp.float32)
    trans = trans.at[start_label_id, :].set(-10000.0)
    trans = trans.at[:, stop_label_id].set(-10000.0)
    # TODO(synk): the BERT encoder is an injected dependency (bert_model); replaced here
    # by a deterministic embedding + layernorm stand-in (layernorm fused into kernel 1).
    word_emb = 0.02 * jax.random.normal(ks[2], (vocab_size, HIDDEN), jnp.float32)
    seg_emb = 0.02 * jax.random.normal(ks[3], (2, HIDDEN), jnp.float32)
    pos_emb = 0.02 * jax.random.normal(ks[4], (max_seq, HIDDEN), jnp.float32)
    return dict(w=w, b=b, transitions=trans,
                word_emb=word_emb, seg_emb=seg_emb, pos_emb=pos_emb)


def bert_crf_forward(params, input_ids, segment_ids, input_mask, start_label_id):
    B, T = input_ids.shape
    L = params["transitions"].shape[0]

    # --- BERT stand-in (embedding sum), built TIME-MAJOR [T, B, H] so the fused
    # kernel's flattened row order (t*B + b) matches the Viterbi feats layout.
    emb = (params["word_emb"][input_ids.T]
           + params["seg_emb"][segment_ids.T]
           + params["pos_emb"][:T, None, :])                       # [T, B, H] f32
    # input_mask is only an attention mask inside BERT; unused by the stand-in.
    # dropout(p=0.2) -> identity at inference time.

    # --- Pallas hot path 1: layernorm + bf16 cast + hidden2label, fused ---
    x = emb.reshape(T * B, HIDDEN)
    feats_p = ln_hidden2label_pallas(x, params["w"], params["b"])  # [T*B, 128] f32

    # Relayout the tiny feats tensor for the Viterbi kernel (batch on lanes).
    feats_v = jnp.transpose(feats_p[:, :L].reshape(T, B, L), (2, 0, 1))  # [L, T, B]

    # --- Pallas hot path 2: Viterbi decode ---
    score, path = viterbi_pallas(feats_v, params["transitions"], start_label_id)
    return score, path


if __name__ == "__main__":
    B, T = 2, 8
    num_labels = 6
    start_label_id, stop_label_id = 4, 5
    vocab_size = 100

    key = jax.random.PRNGKey(0)
    kp, ki, _ = jax.random.split(key, 3)
    params = init_params(kp, vocab_size, T, num_labels, start_label_id, stop_label_id)

    input_ids = jax.random.randint(ki, (B, T), 0, vocab_size, dtype=jnp.int32)
    segment_ids = jnp.zeros((B, T), jnp.int32)
    input_mask = jnp.ones((B, T), jnp.int32)

    score, path = bert_crf_forward(params, input_ids, segment_ids, input_mask,
                                   start_label_id)
    jax.block_until_ready((score, path))
    assert score.shape == (B,) and path.shape == (B, T)
    assert path.dtype == jnp.int32
    print("KERNEL_OK")
</pallas_src>

<mosaic_0001>
module attributes {stable_mosaic.version = 11 : i64} {
  func.func @_ln_linear_kernel(%arg0: i32, %arg1: memref<8x768xf32, #tpu.memory_space<vmem>>, %arg2: memref<768x128xbf16, #tpu.memory_space<vmem>>, %arg3: memref<1x128xf32, #tpu.memory_space<vmem>>, %arg4: memref<8x128xf32, #tpu.memory_space<vmem>>) attributes {dimension_semantics = [#tpu.dimension_semantics<parallel>], iteration_bounds = array<i64: 2>, scalar_prefetch = 0 : i64, scratch_operands = 0 : i64, tpu.core_type = #tpu.core_type<tc>, window_params = [{transform_indices = @transform_0, window_bounds = array<i64: 8, 768>}, {pipeline_mode = #tpu.pipeline_mode<synchronous>, transform_indices = @transform_1, window_bounds = array<i64: 768, 128>}, {pipeline_mode = #tpu.pipeline_mode<synchronous>, transform_indices = @transform_2, window_bounds = array<i64: 1, 128>}, {transform_indices = @transform_3, window_bounds = array<i64: 8, 128>}]} {
    %c0 = arith.constant 0 : index
    %c0_0 = arith.constant 0 : index
    %0 = vector.load %arg1[%c0, %c0_0] : memref<8x768xf32, #tpu.memory_space<vmem>>, vector<8x768xf32>
    %cst = arith.constant dense<0.000000e+00> : vector<8xf32>
    %1 = vector.multi_reduction <add>, %0, %cst [1] : vector<8x768xf32> to vector<8xf32>
    %2 = vector.shape_cast %1 : vector<8xf32> to vector<8x1xf32>
    %cst_1 = arith.constant 7.680000e+02 : f32
    %3 = vector.broadcast %cst_1 : f32 to vector<8x1xf32>
    %4 = arith.divf %2, %3 : vector<8x1xf32>
    %5 = vector.broadcast %4 : vector<8x1xf32> to vector<8x768xf32>
    %6 = arith.subf %0, %5 : vector<8x768xf32>
    %7 = vector.broadcast %4 : vector<8x1xf32> to vector<8x768xf32>
    %8 = arith.subf %0, %7 : vector<8x768xf32>
    %9 = arith.mulf %6, %8 : vector<8x768xf32>
    %cst_2 = arith.constant dense<0.000000e+00> : vector<8xf32>
    %10 = vector.multi_reduction <add>, %9, %cst_2 [1] : vector<8x768xf32> to vector<8xf32>
    %11 = vector.shape_cast %10 : vector<8xf32> to vector<8x1xf32>
    %cst_3 = arith.constant 7.680000e+02 : f32
    %12 = vector.broadcast %cst_3 : f32 to vector<8x1xf32>
    %13 = arith.divf %11, %12 : vector<8x1xf32>
    %14 = vector.broadcast %4 : vector<8x1xf32> to vector<8x768xf32>
    %15 = arith.subf %0, %14 : vector<8x768xf32>
    %cst_4 = arith.constant 9.99999996E-13 : f32
    %16 = vector.broadcast %cst_4 : f32 to vector<8x1xf32>
    %17 = arith.addf %13, %16 : vector<8x1xf32>
    %18 = math.rsqrt %17 : vector<8x1xf32>
    %19 = vector.broadcast %18 : vector<8x1xf32> to vector<8x768xf32>
    %20 = arith.mulf %15, %19 : vector<8x768xf32>
    %21 = arith.truncf %20 : vector<8x768xf32> to vector<8x768xbf16>
    %c0_5 = arith.constant 0 : index
    %c0_6 = arith.constant 0 : index
    %22 = vector.load %arg2[%c0_5, %c0_6] : memref<768x128xbf16, #tpu.memory_space<vmem>>, vector<768x128xbf16>
    %cst_7 = arith.constant dense<0.000000e+00> : vector<8x128xf32>
    %23 = tpu.matmul %21, %22, %cst_7 {dimension_numbers = #tpu.dot_dimension_numbers<[1], [0], [0], [1], [0, 0, 1, 1], [], []>} : vector<8x768xbf16>, vector<768x128xbf16>, vector<8x128xf32> -> vector<8x128xf32>
    %c0_8 = arith.constant 0 : index
    %c0_9 = arith.constant 0 : index
    %24 = vector.load %arg3[%c0_8, %c0_9] : memref<1x128xf32, #tpu.memory_space<vmem>>, vector<1x128xf32>
    %25 = vector.broadcast %24 : vector<1x128xf32> to vector<8x128xf32>
    %26 = arith.addf %23, %25 : vector<8x128xf32>
    %c0_10 = arith.constant 0 : index
    %c0_11 = arith.constant 0 : index
    %27 = vector.load %arg4[%c0_10, %c0_11] : memref<8x128xf32, #tpu.memory_space<vmem>>, vector<8x128xf32>
    tpu.vector_store %arg4[%c0_10, %c0_11], %26 {strides = array<i32>} : memref<8x128xf32, #tpu.memory_space<vmem>>, vector<8x128xf32>,
    return
  }
  func.func @transform_0(%arg0: i32) -> (i32, i32) {
    %c0_i32 = arith.constant 0 : i32
    %c0_i32_0 = arith.constant 0 : i32
    return %arg0, %c0_i32 : i32, i32
  }
  func.func @transform_1(%arg0: i32) -> (i32, i32) {
    %c0_i32 = arith.constant 0 : i32
    %c0_i32_0 = arith.constant 0 : i32
    %c0_i32_1 = arith.constant 0 : i32
    return %c0_i32, %c0_i32_0 : i32, i32
  }
  func.func @transform_2(%arg0: i32) -> (i32, i32) {
    %c0_i32 = arith.constant 0 : i32
    %c0_i32_0 = arith.constant 0 : i32
    %c0_i32_1 = arith.constant 0 : i32
    return %c0_i32, %c0_i32_0 : i32, i32
  }
  func.func @transform_3(%arg0: i32) -> (i32, i32) {
    %c0_i32 = arith.constant 0 : i32
    %c0_i32_0 = arith.constant 0 : i32
    return %arg0, %c0_i32 : i32, i32
  }
}

</mosaic_0001>

<llo_original>
// kernel: tpu_custom_call.1
$region0: #{tpu_custom_call.1}
  #allocation0 [shape = 'u32[]', space=smem, size = 0x4, offset = 0x4, fixed_abs, tag = 'smem constant byte address 0x4 - core index']
  #allocation1 [shape = 'u32[144,128]{1,0:T(1,128)}', space=vmem, size = 0x12000, scoped, tag = 'internal scratch']
  %s0 = inlined_call_operand.hbm [shape: f32[16,768], index: 0, kind: input, shape index: {}]
  %s1 = inlined_call_operand.hbm [shape: bf16[768,128], index: 1, kind: input, shape index: {}]
  %s2 = inlined_call_operand.vmem [shape: f32[1,128], index: 2, kind: input, shape index: {}]
  %s3 = inlined_call_operand.hbm [shape: f32[16,128], index: 3, kind: output, shape index: {}]
  %s4 = sld [smem:[#allocation0]]
  $region53: #{tpu_custom_call.1} parent=0
    _
  %s6 = ssub.s32 1, %s4
  %s7 = scalar_select 0, %s6, %s4
  $region1: #{tpu_custom_call.1} parent=0
    #allocation2 [shape = 'u8[49152]{0}', space=vmem, size = 0xc000, scoped, tag = 'input window, operand 0']
    #allocation3 [shape = 's32[2]{0}', space=sflag, size = 0x8, scoped, tag = 'scoped memory for tpu_custom_call.1']
    #allocation4 [shape = 's32[2]{0}', space=sflag, size = 0x8, scoped, tag = 'scoped memory for tpu_custom_call.1']
    #allocation5 [shape = 'u8[196608]{0}', space=vmem, size = 0x30000, scoped, tag = 'input window, operand 1, single buffered']
    #allocation6 [shape = 's32[1]{0}', space=sflag, size = 0x4, scoped, tag = 'scoped memory for tpu_custom_call.1']
    #allocation7 [shape = 'u8[8192]{0}', space=vmem, size = 0x2000, scoped, tag = 'output window, operand 0']
    %8 = vsyncpa [#allocation3], 0
    %s9 = scalar_lea.sflag [#allocation3], 1
    %10 = vsyncpa %s9, 0
    %11 = vsyncpa [#allocation6], 0
    %12 = vsyncpa [#allocation4], 0
    %s13 = scalar_lea.sflag [#allocation4], 1
    %14 = vsyncpa %s13, 0
    loop: start=0, step=1, limit=4
    $region2: #{tpu_custom_call.1} parent=1 // loop_pre_header
      _
    $region3: #{tpu_custom_call.1} parent=1 // loop_header
      %s16 = sphi 0, %s20
      %p17 = scmp.ge.s32.totalorder %s16, 4
      %s26 = sphi 0, %s28
      %s29 = sphi 0, %s26
      %s30 = sphi 0, %s29
      %s46 = sphi 0, %s30
      %s50 = sphi 0, %s50
      %s52 = sphi 0, %s50
      %s53 = sphi 0, %s52
      %s67 = sphi 0, %s53
      %s71 = sphi 0, %s71
      %s73 = sphi 0, %s71
      %s74 = sphi 0, %s73
      %s88 = sphi 0, %s74
      %s94 = sphi 0, %s96
      %s97 = sphi 0, %s94
      %s98 = sphi 0, %s97
      %s114 = sphi 0, %s98
    $region4: #{tpu_custom_call.1} parent=1 // loop_header_branch
      %19 = sbr.rel (%p17) target = $region8
    $region5: #{tpu_custom_call.1} parent=1 // loop_body
      %s21 = ssub.s32 %s16, 1
      %s22 = ssub.s32 %s16, 2
      %s23 = sadd.s32 %s16, 1
      %s24 = ssub.s32 %s16, %s23
      %p25 = scmp.eq.s32.totalorder %s24, 0
      %s27 = sadd.s32 %s26, 1
      %s28 = scalar_select %p25, %s26, %s27
      %p31 = pneg %p25
      %p32 = scmp.eq.s32.totalorder %s16, 1
      %p33 = por %p31, %p32
      %p34 = scmp.ne.s32.totalorder %s26, %s29
      %p35 = scmp.eq.s32.totalorder %s16, 0
      %p36 = por %p34, %p35
      %p37 = scmp.ne.s32.totalorder %s26, %s29
      %p38 = scmp.eq.s32.totalorder %s21, 1
      %p39 = por %p37, %p38
      %p40 = scmp.ne.s32.totalorder %s29, %s30
      %p41 = scmp.eq.s32.totalorder %s21, 0
      %p42 = por %p40, %p41
      %p43 = scmp.ne.s32.totalorder %s29, %s30
      %p44 = scmp.eq.s32.totalorder %s22, 1
      %p45 = por %p43, %p44
      %p47 = scmp.ne.s32.totalorder %s30, %s46
      %p48 = scmp.eq.s32.totalorder %s22, 0
      %p49 = por %p47, %p48
      %s51 = sadd.s32 %s50, 1
      %p54 = scmp.eq.s32.totalorder %s16, 1
      %p55 = scmp.ne.s32.totalorder %s50, %s52
      %p56 = scmp.eq.s32.totalorder %s16, 0
      %p57 = por %p55, %p56
      %p58 = scmp.ne.s32.totalorder %s50, %s52
      %p59 = scmp.eq.s32.totalorder %s21, 1
      %p60 = por %p58, %p59
      %p61 = scmp.ne.s32.totalorder %s52, %s53
      %p62 = scmp.eq.s32.totalorder %s21, 0
      %p63 = por %p61, %p62
      %p64 = scmp.ne.s32.totalorder %s52, %s53
      %p65 = scmp.eq.s32.totalorder %s22, 1
      %p66 = por %p64, %p65
      %p68 = scmp.ne.s32.totalorder %s53, %s67
      %p69 = scmp.eq.s32.totalorder %s22, 0
      %p70 = por %p68, %p69
      %s72 = sadd.s32 %s71, 1
      %p75 = scmp.eq.s32.totalorder %s16, 1
      %p76 = scmp.ne.s32.totalorder %s71, %s73
      %p77 = scmp.eq.s32.totalorder %s16, 0
      %p78 = por %p76, %p77
      %p79 = scmp.ne.s32.totalorder %s71, %s73
      %p80 = scmp.eq.s32.totalorder %s21, 1
      %p81 = por %p79, %p80
      %p82 = scmp.ne.s32.totalorder %s73, %s74
      %p83 = scmp.eq.s32.totalorder %s21, 0
      %p84 = por %p82, %p83
      %p85 = scmp.ne.s32.totalorder %s73, %s74
      %p86 = scmp.eq.s32.totalorder %s22, 1
      %p87 = por %p85, %p86
      %p89 = scmp.ne.s32.totalorder %s74, %s88
      %p90 = scmp.eq.s32.totalorder %s22, 0
      %p91 = por %p89, %p90
      %s92 = ssub.s32 %s16, %s23
      %p93 = scmp.eq.s32.totalorder %s92, 0
      %s95 = sadd.s32 %s94, 1
      %s96 = scalar_select %p93, %s94, %s95
      %p99 = pneg %p93
      %p100 = scmp.eq.s32.totalorder %s16, 1
      %p101 = por %p99, %p100
      %p102 = scmp.ne.s32.totalorder %s94, %s97
      %p103 = scmp.eq.s32.totalorder %s16, 0
      %p104 = por %p102, %p103
      %p105 = scmp.ne.s32.totalorder %s94, %s97
      %p106 = scmp.eq.s32.totalorder %s21, 1
      %p107 = por %p105, %p106
      %p108 = scmp.ne.s32.totalorder %s97, %s98
      %p109 = scmp.eq.s32.totalorder %s21, 0
      %p110 = por %p108, %p109
      %p111 = scmp.ne.s32.totalorder %s97, %s98
      %p112 = scmp.eq.s32.totalorder %s22, 1
      %p113 = por %p111, %p112
      %p115 = scmp.ne.s32.totalorder %s98, %s114
      %p116 = scmp.eq.s32.totalorder %s22, 0
      %p117 = por %p115, %p116
      %p118 = scmp.le.s32.totalorder 1, %s16
      %p119 = scmp.lt.s32.totalorder %s16, 3
      %p120 = pnand %p118, %p119
      %p121 = pneg %p120
      // Predicated region
      $region9: #{tpu_custom_call.1} parent=5 // pred_check
        _
      $region10: #{tpu_custom_call.1} parent=5 // pred_check_branch
        %123 = sbr.rel (%p120) target = $region12
      $region11: #{tpu_custom_call.1} parent=5 // pred_region
        %s124 = ssub.s32 %s16, 1
        // Predicated region
        $region13: #{tpu_custom_call.1} parent=11 // pred_check
          %p125 = pneg %p63
        $region14: #{tpu_custom_call.1} parent=11 // pred_check_branch
          %127 = sbr.rel (%p125) target = $region16
        $region15: #{tpu_custom_call.1} parent=11 // pred_region
          %s129 = ssub.s32 6144, 6144
          %130 = vsyncadd [#allocation6], %s129
          %s131 = sshll.u32 [#allocation5], 4
          %s132 = int_to_ptr.vmem [resolvable:$true] %s131
          %137 = dma.hbm_to_vmem [thread:$0]  %s1, 6144, %s132, [#allocation6], 64, 64, 4
        $region16: #{tpu_custom_call.1} parent=11 // pred_fallthru
          _
        // Predicated region
        $region17: #{tpu_custom_call.1} parent=11 // pred_check
          %p138 = pneg %p84
        $region18: #{tpu_custom_call.1} parent=11 // pred_check_branch
          %140 = sbr.rel (%p138) target = $region20
        $region19: #{tpu_custom_call.1} parent=11 // pred_region
          _
        $region20: #{tpu_custom_call.1} parent=11 // pred_fallthru
          _
      $region12: #{tpu_custom_call.1} parent=5 // pred_fallthru
        _
      %p141 = scmp.lt.s32.totalorder %s16, 2
      // Predicated region
      $region21: #{tpu_custom_call.1} parent=5 // pred_check
        %p142 = pneg %p141
      $region22: #{tpu_custom_call.1} parent=5 // pred_check_branch
        %144 = sbr.rel (%p142) target = $region24
      $region23: #{tpu_custom_call.1} parent=5 // pred_region
        // Predicated region
        $region25: #{tpu_custom_call.1} parent=23 // pred_check
          %p145 = pneg %p36
        $region26: #{tpu_custom_call.1} parent=23 // pred_check_branch
          %147 = sbr.rel (%p145) target = $region28
        $region27: #{tpu_custom_call.1} parent=23 // pred_region
          %s148 = sand.u32 %s26, 1
          %s149 = scalar_lea.sflag [#allocation3], %s148
          %s150 = sand.u32 %s26, 1
          %s151 = smul.addr %s150, 48
          %s152 = scalar_lea.vmem [#allocation2], %s151
          %s154 = ssub.s32 768, 768
          %155 = vsyncadd %s149, %s154
          %s156 = smul.addr %s16, 6
          %s157 = smul.addr %s156, 128
          %s158 = scalar_lea.hbm %s0, %s157
          %s160 = sshll.u32 %s152, 4
          %s161 = int_to_ptr.vmem [resolvable:$true] %s160
          %163 = dma.hbm_to_vmem [thread:$0]  %s158, 768, %s161, %s149
        $region28: #{tpu_custom_call.1} parent=23 // pred_fallthru
          _
      $region24: #{tpu_custom_call.1} parent=5 // pred_fallthru
        _
      %p164 = scmp.le.s32.totalorder 1, %s16
      %p165 = scmp.lt.s32.totalorder %s16, 3
      %p166 = pnand %p164, %p165
      %p167 = pneg %p166
      // Predicated region
      $region29: #{tpu_custom_call.1} parent=5 // pred_check
        _
      $region30: #{tpu_custom_call.1} parent=5 // pred_check_branch
        %169 = sbr.rel (%p166) target = $region32
      $region31: #{tpu_custom_call.1} parent=5 // pred_region
        %s170 = ssub.s32 %s16, 1
        %s171 = sand.u32 %s29, 1
        %s172 = scalar_lea.sflag [#allocation3], %s171
        %s173 = sand.u32 %s29, 1
        %s174 = smul.addr %s173, 48
        %s175 = scalar_lea.vmem [#allocation2], %s174
        // Predicated region
        $region33: #{tpu_custom_call.1} parent=31 // pred_check
          %p176 = pneg %p42
        $region34: #{tpu_custom_call.1} parent=31 // pred_check_branch
          %178 = sbr.rel (%p176) target = $region36
        $region35: #{tpu_custom_call.1} parent=31 // pred_region
          %179 = dma.done %s172, 768
        $region36: #{tpu_custom_call.1} parent=31 // pred_fallthru
          _
        // Predicated region
        $region37: #{tpu_custom_call.1} parent=31 // pred_check
          %p180 = pneg %p63
        $region38: #{tpu_custom_call.1} parent=31 // pred_check_branch
          %182 = sbr.rel (%p180) target = $region40
        $region39: #{tpu_custom_call.1} parent=31 // pred_region
          %183 = dma.done [#allocation6], 6144
        $region40: #{tpu_custom_call.1} parent=31 // pred_fallthru
          _
        %s184 = sand.u32 %s29, 1
        %s185 = scalar_lea.sflag [#allocation3], %s184
        %s186 = sand.u32 %s29, 1
        %s187 = smul.addr %s186, 48
        %s188 = scalar_lea.vmem [#allocation2], %s187
        %p189 = pneg %p42
        %p190 = pneg %p39
        %p191 = pneg %p63
        %p192 = pneg %p60
        %p193 = pneg %p84
        %p194 = pneg %p81
        %p195 = pneg %p110
        %p196 = pneg %p107
        %s197 = sand.u32 %s97, 1
        %s198 = scalar_lea.sflag [#allocation4], %s197
        %s199 = sand.u32 %s97, 1
        %s200 = smul.addr %s199, 8
        %s201 = scalar_lea.vmem [#allocation7], %s200
        %v203 = vld [vmem:[%s175] sm:$0xff]
        %v204 = vld [vmem:[%s175 + $0x8] sm:$0xff]
        %v205 = vld [vmem:[%s175 + $0x10] sm:$0xff]
        %v206 = vld [vmem:[%s175 + $0x18] sm:$0xff]
        %v207 = vld [vmem:[%s175 + $0x20] sm:$0xff]
        %v208 = vld [vmem:[%s175 + $0x28] sm:$0xff]
        %v209 = vadd.f32 %v203, %v204
        %v210 = vadd.f32 %v209, %v205
        %v211 = vadd.f32 %v210, %v206
        %v212 = vadd.f32 %v211, %v207
        %v213 = vadd.f32 %v212, %v208
        %214 = vadd.xlane.f32.xlu0 %v213
        %v215 = vpop.xlane.xlu0 %214
        %v216 = vrcp.pop 768.0
        %v217 = vmul.f32 %v215, %v216
        %v218 = vsub.f32 %v203, %v217
        %v219 = vsub.f32 %v204, %v217
        %v220 = vsub.f32 %v205, %v217
        %v221 = vsub.f32 %v206, %v217
        %v222 = vsub.f32 %v207, %v217
        %v223 = vsub.f32 %v208, %v217
        %v224 = vmul.f32 %v218, %v218
        %v225 = vmul.f32 %v219, %v219
        %v226 = vmul.f32 %v220, %v220
        %v227 = vmul.f32 %v221, %v221
        %v228 = vmul.f32 %v222, %v222
        %v229 = vmul.f32 %v223, %v223
        %v230 = vadd.f32 %v224, %v225
        %v231 = vadd.f32 %v230, %v226
        %v232 = vadd.f32 %v231, %v227
        %v233 = vadd.f32 %v232, %v228
        %v234 = vadd.f32 %v233, %v229
        %235 = vadd.xlane.f32.xlu0 %v234
        %v236 = vpop.xlane.xlu0 %235
        %v237 = vmul.f32 %v236, %v216
        %v238 = vadd.f32 %v237, 1e-12
        %v239 = vrsqrt.pop %v238
        %v240 = vmul.f32 %v218, %v239
        %v241 = vmul.f32 %v219, %v239
        %v242 = vmul.f32 %v220, %v239
        %v243 = vmul.f32 %v221, %v239
        %v244 = vmul.f32 %v222, %v239
        %v245 = vmul.f32 %v223, %v239
        %v246 = vpack.c.bf16 %v240, %v240
        %v247 = vpack.c.bf16 %v241, %v241
        %v248 = vpack.c.bf16 %v242, %v242
        %v249 = vpack.c.bf16 %v243, %v243
        %v250 = vpack.c.bf16 %v244, %v244
        %v251 = vpack.c.bf16 %v245, %v245
        %v252 = vld [vmem:[#allocation5] sm:$0xf]
        %v253 = vld [vmem:[#allocation5 + $0x4] sm:$0xf]
        %v254 = vld [vmem:[#allocation5 + $0x8] sm:$0xf]
        %v255 = vld [vmem:[#allocation5 + $0xc] sm:$0xf]
        %v256 = vld [vmem:[#allocation5 + $0x10] sm:$0xf]
        %v257 = vld [vmem:[#allocation5 + $0x14] sm:$0xf]
        %v258 = vld [vmem:[#allocation5 + $0x18] sm:$0xf]
        %v259 = vld [vmem:[#allocation5 + $0x1c] sm:$0xf]
        %v260 = vld [vmem:[#allocation5 + $0x20] sm:$0xf]
        %v261 = vld [vmem:[#allocation5 + $0x24] sm:$0xf]
        %v262 = vld [vmem:[#allocation5 + $0x28] sm:$0xf]
        %v263 = vld [vmem:[#allocation5 + $0x2c] sm:$0xf]
        %v264 = vld [vmem:[#allocation5 + $0x30] sm:$0xf]
        %v265 = vld [vmem:[#allocation5 + $0x34] sm:$0xf]
        %v266 = vld [vmem:[#allocation5 + $0x38] sm:$0xf]
        %v267 = vld [vmem:[#allocation5 + $0x3c] sm:$0xf]
        %v268 = vld [vmem:[#allocation5 + $0x40] sm:$0xf]
        %v269 = vld [vmem:[#allocation5 + $0x44] sm:$0xf]
        %v270 = vld [vmem:[#allocation5 + $0x48] sm:$0xf]
        %v271 = vld [vmem:[#allocation5 + $0x4c] sm:$0xf]
        %v272 = vld [vmem:[#allocation5 + $0x50] sm:$0xf]
        %v273 = vld [vmem:[#allocation5 + $0x54] sm:$0xf]
        %v274 = vld [vmem:[#allocation5 + $0x58] sm:$0xf]
        %v275 = vld [vmem:[#allocation5 + $0x5c] sm:$0xf]
        %v276 = vld [vmem:[#allocation5 + $0x60] sm:$0xf]
        %v277 = vld [vmem:[#allocation5 + $0x64] sm:$0xf]
        %v278 = vld [vmem:[#allocation5 + $0x68] sm:$0xf]
        %v279 = vld [vmem:[#allocation5 + $0x6c] sm:$0xf]
        %v280 = vld [vmem:[#allocation5 + $0x70] sm:$0xf]
        %v281 = vld [vmem:[#allocation5 + $0x74] sm:$0xf]
        %v282 = vld [vmem:[#allocation5 + $0x78] sm:$0xf]
        %v283 = vld [vmem:[#allocation5 + $0x7c] sm:$0xf]
        %v284 = vld [vmem:[#allocation5 + $0x80] sm:$0xf]
        %v285 = vld [vmem:[#allocation5 + $0x84] sm:$0xf]
        %v286 = vld [vmem:[#allocation5 + $0x88] sm:$0xf]
        %v287 = vld [vmem:[#allocation5 + $0x8c] sm:$0xf]
        %v288 = vld [vmem:[#allocation5 + $0x90] sm:$0xf]
        %v289 = vld [vmem:[#allocation5 + $0x94] sm:$0xf]
        %v290 = vld [vmem:[#allocation5 + $0x98] sm:$0xf]
        %v291 = vld [vmem:[#allocation5 + $0x9c] sm:$0xf]
        %v292 = vld [vmem:[#allocation5 + $0xa0] sm:$0xf]
        %v293 = vld [vmem:[#allocation5 + $0xa4] sm:$0xf]
        %v294 = vld [vmem:[#allocation5 + $0xa8] sm:$0xf]
        %v295 = vld [vmem:[#allocation5 + $0xac] sm:$0xf]
        %v296 = vld [vmem:[#allocation5 + $0xb0] sm:$0xf]
        %v297 = vld [vmem:[#allocation5 + $0xb4] sm:$0xf]
        %v298 = vld [vmem:[#allocation5 + $0xb8] sm:$0xf]
        %v299 = vld [vmem:[#allocation5 + $0xbc] sm:$0xf]
        %v300 = vld [vmem:[#allocation5 + $0xc0] sm:$0xf]
        %v301 = vld [vmem:[#allocation5 + $0xc4] sm:$0xf]
        %v302 = vld [vmem:[#allocation5 + $0xc8] sm:$0xf]
        %v303 = vld [vmem:[#allocation5 + $0xcc] sm:$0xf]
        %v304 = vld [vmem:[#allocation5 + $0xd0] sm:$0xf]
        %v305 = vld [vmem:[#allocation5 + $0xd4] sm:$0xf]
        %v306 = vld [vmem:[#allocation5 + $0xd8] sm:$0xf]
        %v307 = vld [vmem:[#allocation5 + $0xdc] sm:$0xf]
        %v308 = vld [vmem:[#allocation5 + $0xe0] sm:$0xf]
        %v309 = vld [vmem:[#allocation5 + $0xe4] sm:$0xf]
        %v310 = vld [vmem:[#allocation5 + $0xe8] sm:$0xf]
        %v311 = vld [vmem:[#allocation5 + $0xec] sm:$0xf]
        %v312 = vld [vmem:[#allocation5 + $0xf0] sm:$0xf]
        %v313 = vld [vmem:[#allocation5 + $0xf4] sm:$0xf]
        %v314 = vld [vmem:[#allocation5 + $0xf8] sm:$0xf]
        %v315 = vld [vmem:[#allocation5 + $0xfc] sm:$0xf]
        %v316 = vld [vmem:[#allocation5 + $0x100] sm:$0xf]
        %v317 = vld [vmem:[#allocation5 + $0x104] sm:$0xf]
        %v318 = vld [vmem:[#allocation5 + $0x108] sm:$0xf]
        %v319 = vld [vmem:[#allocation5 + $0x10c] sm:$0xf]
        %v320 = vld [vmem:[#allocation5 + $0x110] sm:$0xf]
        %v321 = vld [vmem:[#allocation5 + $0x114] sm:$0xf]
        %v322 = vld [vmem:[#allocation5 + $0x118] sm:$0xf]
        %v323 = vld [vmem:[#allocation5 + $0x11c] sm:$0xf]
        %v324 = vld [vmem:[#allocation5 + $0x120] sm:$0xf]
        %v325 = vld [vmem:[#allocation5 + $0x124] sm:$0xf]
        %v326 = vld [vmem:[#allocation5 + $0x128] sm:$0xf]
        %v327 = vld [vmem:[#allocation5 + $0x12c] sm:$0xf]
        %v328 = vld [vmem:[#allocation5 + $0x130] sm:$0xf]
        %v329 = vld [vmem:[#allocation5 + $0x134] sm:$0xf]
        %v330 = vld [vmem:[#allocation5 + $0x138] sm:$0xf]
        %v331 = vld [vmem:[#allocation5 + $0x13c] sm:$0xf]
        %v332 = vld [vmem:[#allocation5 + $0x140] sm:$0xf]
        %v333 = vld [vmem:[#allocation5 + $0x144] sm:$0xf]
        %v334 = vld [vmem:[#allocation5 + $0x148] sm:$0xf]
        %v335 = vld [vmem:[#allocation5 + $0x14c] sm:$0xf]
        %v336 = vld [vmem:[#allocation5 + $0x150] sm:$0xf]
        %v337 = vld [vmem:[#allocation5 + $0x154] sm:$0xf]
        %v338 = vld [vmem:[#allocation5 + $0x158] sm:$0xf]
        %v339 = vld [vmem:[#allocation5 + $0x15c] sm:$0xf]
        %v340 = vld [vmem:[#allocation5 + $0x160] sm:$0xf]
        %v341 = vld [vmem:[#allocation5 + $0x164] sm:$0xf]
        %v342 = vld [vmem:[#allocation5 + $0x168] sm:$0xf]
        %v343 = vld [vmem:[#allocation5 + $0x16c] sm:$0xf]
        %v344 = vld [vmem:[#allocation5 + $0x170] sm:$0xf]
        %v345 = vld [vmem:[#allocation5 + $0x174] sm:$0xf]
        %v346 = vld [vmem:[#allocation5 + $0x178] sm:$0xf]
        %v347 = vld [vmem:[#allocation5 + $0x17c] sm:$0xf]
        %v348 = vld [vmem:[%s2] sm:$0x1]
        %v350 = vlaneseq
        %v351 = vshrl.u32 %v350, 7
        %v352 = vsub.s32 0, %v351
        %v353 = vrot.slane %v348, %v352
        %v451 = vunpack.c.l.b16 %v252
        %v452 = vunpack.c.l.b16 %v253
        %v453 = vunpack.c.l.b16 %v254
        %v454 = vunpack.c.l.b16 %v255
        %v455 = vunpack.c.l.b16 %v256
        %v456 = vunpack.c.l.b16 %v257
        %v457 = vunpack.c.l.b16 %v258
        %v458 = vunpack.c.l.b16 %v259
        %v459 = vunpack.c.l.b16 %v260
        %v460 = vunpack.c.l.b16 %v261
        %v461 = vunpack.c.l.b16 %v262
        %v462 = vunpack.c.l.b16 %v263
        %v463 = vunpack.c.l.b16 %v264
        %v464 = vunpack.c.l.b16 %v265
        %v465 = vunpack.c.l.b16 %v266
        %v466 = vunpack.c.l.b16 %v267
        %v467 = vunpack.c.l.b16 %v268
        %v468 = vunpack.c.l.b16 %v269
        %v469 = vunpack.c.l.b16 %v270
        %v470 = vunpack.c.l.b16 %v271
        %v471 = vunpack.c.l.b16 %v272
        %v472 = vunpack.c.l.b16 %v273
        %v473 = vunpack.c.l.b16 %v274
        %v474 = vunpack.c.l.b16 %v275
        %v475 = vunpack.c.l.b16 %v276
        %v476 = vunpack.c.l.b16 %v277
        %v477 = vunpack.c.l.b16 %v278
        %v478 = vunpack.c.l.b16 %v279
        %v479 = vunpack.c.l.b16 %v280
        %v480 = vunpack.c.l.b16 %v281
        %v481 = vunpack.c.l.b16 %v282
        %v482 = vunpack.c.l.b16 %v283
        %v483 = vunpack.c.l.b16 %v284
        %v484 = vunpack.c.l.b16 %v285
        %v485 = vunpack.c.l.b16 %v286
        %v486 = vunpack.c.l.b16 %v287
        %v487 = vunpack.c.l.b16 %v288
        %v488 = vunpack.c.l.b16 %v289
        %v489 = vunpack.c.l.b16 %v290
        %v490 = vunpack.c.l.b16 %v291
        %v491 = vunpack.c.l.b16 %v292
        %v492 = vunpack.c.l.b16 %v293
        %v493 = vunpack.c.l.b16 %v294
        %v494 = vunpack.c.l.b16 %v295
        %v495 = vunpack.c.l.b16 %v296
        %v496 = vunpack.c.l.b16 %v297
        %v497 = vunpack.c.l.b16 %v298
        %v498 = vunpack.c.l.b16 %v299
        %v499 = vunpack.c.l.b16 %v300
        %v500 = vunpack.c.l.b16 %v301
        %v501 = vunpack.c.l.b16 %v302
        %v502 = vunpack.c.l.b16 %v303
        %v503 = vunpack.c.l.b16 %v304
        %v504 = vunpack.c.l.b16 %v305
        %v505 = vunpack.c.l.b16 %v306
        %v506 = vunpack.c.l.b16 %v307
        %v507 = vunpack.c.l.b16 %v308
        %v508 = vunpack.c.l.b16 %v309
        %v509 = vunpack.c.l.b16 %v310
        %v510 = vunpack.c.l.b16 %v311
        %v511 = vunpack.c.l.b16 %v312
        %v512 = vunpack.c.l.b16 %v313
        %v513 = vunpack.c.l.b16 %v314
        %v514 = vunpack.c.l.b16 %v315
        %v515 = vunpack.c.l.b16 %v316
        %v516 = vunpack.c.l.b16 %v317
        %v517 = vunpack.c.l.b16 %v318
        %v518 = vunpack.c.l.b16 %v319
        %v519 = vunpack.c.l.b16 %v320
        %v520 = vunpack.c.l.b16 %v321
        %v521 = vunpack.c.l.b16 %v322
        %v522 = vunpack.c.l.b16 %v323
        %v523 = vunpack.c.l.b16 %v324
        %v524 = vunpack.c.l.b16 %v325
        %v525 = vunpack.c.l.b16 %v326
        %v526 = vunpack.c.l.b16 %v327
        %v527 = vunpack.c.l.b16 %v328
        %v528 = vunpack.c.l.b16 %v329
        %v529 = vunpack.c.l.b16 %v330
        %v530 = vunpack.c.l.b16 %v331
        %v531 = vunpack.c.l.b16 %v332
        %v532 = vunpack.c.l.b16 %v333
        %v533 = vunpack.c.l.b16 %v334
        %v534 = vunpack.c.l.b16 %v335
        %v535 = vunpack.c.l.b16 %v336
        %v536 = vunpack.c.l.b16 %v337
        %v537 = vunpack.c.l.b16 %v338
        %v538 = vunpack.c.l.b16 %v339
        %v539 = vunpack.c.l.b16 %v340
        %v540 = vunpack.c.l.b16 %v341
        %v541 = vunpack.c.l.b16 %v342
        %v542 = vunpack.c.l.b16 %v343
        %v543 = vunpack.c.l.b16 %v344
        %v544 = vunpack.c.l.b16 %v345
        %v545 = vunpack.c.l.b16 %v346
        %v546 = vunpack.c.l.b16 %v347
        %v547 = vpack.c.b16 %v452, %v451
        %v548 = vpack.c.b16 %v454, %v453
        %v549 = vpack.c.b16 %v456, %v455
        %v550 = vpack.c.b16 %v458, %v457
        %v551 = vpack.c.b16 %v460, %v459
        %v552 = vpack.c.b16 %v462, %v461
        %v553 = vpack.c.b16 %v464, %v463
        %v554 = vpack.c.b16 %v466, %v465
        %v555 = vpack.c.b16 %v468, %v467
        %v556 = vpack.c.b16 %v470, %v469
        %v557 = vpack.c.b16 %v472, %v471
        %v558 = vpack.c.b16 %v474, %v473
        %v559 = vpack.c.b16 %v476, %v475
        %v560 = vpack.c.b16 %v478, %v477
        %v561 = vpack.c.b16 %v480, %v479
        %v562 = vpack.c.b16 %v482, %v481
        %v563 = vpack.c.b16 %v484, %v483
        %v564 = vpack.c.b16 %v486, %v485
        %v565 = vpack.c.b16 %v488, %v487
        %v566 = vpack.c.b16 %v490, %v489
        %v567 = vpack.c.b16 %v492, %v491
        %v568 = vpack.c.b16 %v494, %v493
        %v569 = vpack.c.b16 %v496, %v495
        %v570 = vpack.c.b16 %v498, %v497
        %v571 = vpack.c.b16 %v500, %v499
        %v572 = vpack.c.b16 %v502, %v501
        %v573 = vpack.c.b16 %v504, %v503
        %v574 = vpack.c.b16 %v506, %v505
        %v575 = vpack.c.b16 %v508, %v507
        %v576 = vpack.c.b16 %v510, %v509
        %v577 = vpack.c.b16 %v512, %v511
        %v578 = vpack.c.b16 %v514, %v513
        %v579 = vpack.c.b16 %v516, %v515
        %v580 = vpack.c.b16 %v518, %v517
        %v581 = vpack.c.b16 %v520, %v519
        %v582 = vpack.c.b16 %v522, %v521
        %v583 = vpack.c.b16 %v524, %v523
        %v584 = vpack.c.b16 %v526, %v525
        %v585 = vpack.c.b16 %v528, %v527
        %v586 = vpack.c.b16 %v530, %v529
        %v587 = vpack.c.b16 %v532, %v531
        %v588 = vpack.c.b16 %v534, %v533
        %v589 = vpack.c.b16 %v536, %v535
        %v590 = vpack.c.b16 %v538, %v537
        %v591 = vpack.c.b16 %v540, %v539
        %v592 = vpack.c.b16 %v542, %v541
        %v593 = vpack.c.b16 %v544, %v543
        %v594 = vpack.c.b16 %v546, %v545
        %643 = vmatprep.subr.bf16.mxu0 0
        %644 = vmatpush1.bf16.msra.mxu0 %v547
        %645 = vmatprep.subr.bf16.mxu0 0
        %646 = vmatpush1.bf16.msra.mxu0 %v548
        %647 = vmatprep.subr.bf16.mxu0 0
        %648 = vmatpush1.bf16.msra.mxu0 %v549
        %649 = vmatprep.subr.bf16.mxu0 0
        %650 = vmatpush1.bf16.msra.mxu0 %v550
        %651 = vmatprep.subr.bf16.mxu0 0
        %652 = vmatpush1.bf16.msra.mxu0 %v551
        %653 = vmatprep.subr.bf16.mxu0 0
        %654 = vmatpush1.bf16.msra.mxu0 %v552
        %655 = vmatprep.subr.bf16.mxu0 0
        %656 = vmatpush1.bf16.msra.mxu0 %v553
        %657 = vmatprep.subr.bf16.mxu0 0
        %658 = vmatpush1.bf16.msra.mxu0 %v554
        %659 = vmatprep.subr.bf16.mxu0 0
        %660 = vmatpush1.bf16.msra.mxu0 %v555
        %661 = vmatprep.subr.bf16.mxu0 0
        %662 = vmatpush1.bf16.msra.mxu0 %v556
        %663 = vmatprep.subr.bf16.mxu0 0
        %664 = vmatpush1.bf16.msra.mxu0 %v557
        %665 = vmatprep.subr.bf16.mxu0 0
        %666 = vmatpush1.bf16.msra.mxu0 %v558
        %667 = vmatprep.subr.bf16.mxu0 0
        %668 = vmatpush1.bf16.msra.mxu0 %v559
        %669 = vmatprep.subr.bf16.mxu0 0
        %670 = vmatpush1.bf16.msra.mxu0 %v560
        %671 = vmatprep.subr.bf16.mxu0 0
        %672 = vmatpush1.bf16.msra.mxu0 %v561
        %673 = vmatprep.subr.bf16.mxu0 0
        %674 = vmatpush1.bf16.msra.mxu0 %v562
        %675 = vmatprep.mubr.bf16.mxu0 %v247
        %676 = vmatmul.mubr.bf16.gmra.mrb[0].mxu0 %v246
        %v677 = vpop.f32.mrb[0].mxu0
        %v678 = vadd.f32 %v353, %v677
        %v679 = vpop.f32.mrb[0].mxu0
        %v680 = vpop.f32.mrb[0].mxu0
        %v681 = vpop.f32.mrb[0].mxu0
        %682 = vdwg.mxu0
        %683 = vmatprep.subr.bf16.mxu0 0
        %684 = vmatpush1.bf16.msra.mxu0 %v563
        %685 = vmatprep.subr.bf16.mxu0 0
        %686 = vmatpush1.bf16.msra.mxu0 %v564
        %687 = vmatprep.subr.bf16.mxu0 0
        %688 = vmatpush1.bf16.msra.mxu0 %v565
        %689 = vmatprep.subr.bf16.mxu0 0
        %690 = vmatpush1.bf16.msra.mxu0 %v566
        %691 = vmatprep.subr.bf16.mxu0 0
        %692 = vmatpush1.bf16.msra.mxu0 %v567
        %693 = vmatprep.subr.bf16.mxu0 0
        %694 = vmatpush1.bf16.msra.mxu0 %v568
        %695 = vmatprep.subr.bf16.mxu0 0
        %696 = vmatpush1.bf16.msra.mxu0 %v569
        %697 = vmatprep.subr.bf16.mxu0 0
        %698 = vmatpush1.bf16.msra.mxu0 %v570
        %699 = vmatprep.subr.bf16.mxu0 0
        %700 = vmatpush1.bf16.msra.mxu0 %v571
        %701 = vmatprep.subr.bf16.mxu0 0
        %702 = vmatpush1.bf16.msra.mxu0 %v572
        %703 = vmatprep.subr.bf16.mxu0 0
        %704 = vmatpush1.bf16.msra.mxu0 %v573
        %705 = vmatprep.subr.bf16.mxu0 0
        %706 = vmatpush1.bf16.msra.mxu0 %v574
        %707 = vmatprep.subr.bf16.mxu0 0
        %708 = vmatpush1.bf16.msra.mxu0 %v575
        %709 = vmatprep.subr.bf16.mxu0 0
        %710 = vmatpush1.bf16.msra.mxu0 %v576
        %711 = vmatprep.subr.bf16.mxu0 0
        %712 = vmatpush1.bf16.msra.mxu0 %v577
        %713 = vmatprep.subr.bf16.mxu0 0
        %714 = vmatpush1.bf16.msra.mxu0 %v578
        %715 = vmatprep.mubr.bf16.mxu0 %v249
        %716 = vmatmul.mubr.bf16.gmra.mrb[0].mxu0 %v248
        %v717 = vpop.f32.mrb[0].mxu0
        %v718 = vadd.f32 %v678, %v717
        %v719 = vpop.f32.mrb[0].mxu0
        %v720 = vpop.f32.mrb[0].mxu0
        %v721 = vpop.f32.mrb[0].mxu0
        %722 = vdwg.mxu0
        %723 = vmatprep.subr.bf16.mxu0 0
        %724 = vmatpush1.bf16.msra.mxu0 %v579
        %725 = vmatprep.subr.bf16.mxu0 0
        %726 = vmatpush1.bf16.msra.mxu0 %v580
        %727 = vmatprep.subr.bf16.mxu0 0
        %728 = vmatpush1.bf16.msra.mxu0 %v581
        %729 = vmatprep.subr.bf16.mxu0 0
        %730 = vmatpush1.bf16.msra.mxu0 %v582
        %731 = vmatprep.subr.bf16.mxu0 0
        %732 = vmatpush1.bf16.msra.mxu0 %v583
        %733 = vmatprep.subr.bf16.mxu0 0
        %734 = vmatpush1.bf16.msra.mxu0 %v584
        %735 = vmatprep.subr.bf16.mxu0 0
        %736 = vmatpush1.bf16.msra.mxu0 %v585
        %737 = vmatprep.subr.bf16.mxu0 0
        %738 = vmatpush1.bf16.msra.mxu0 %v586
        %739 = vmatprep.subr.bf16.mxu0 0
        %740 = vmatpush1.bf16.msra.mxu0 %v587
        %741 = vmatprep.subr.bf16.mxu0 0
        %742 = vmatpush1.bf16.msra.mxu0 %v588
        %743 = vmatprep.subr.bf16.mxu0 0
        %744 = vmatpush1.bf16.msra.mxu0 %v589
        %745 = vmatprep.subr.bf16.mxu0 0
        %746 = vmatpush1.bf16.msra.mxu0 %v590
        %747 = vmatprep.subr.bf16.mxu0 0
        %748 = vmatpush1.bf16.msra.mxu0 %v591
        %749 = vmatprep.subr.bf16.mxu0 0
        %750 = vmatpush1.bf16.msra.mxu0 %v592
        %751 = vmatprep.subr.bf16.mxu0 0
        %752 = vmatpush1.bf16.msra.mxu0 %v593
        %753 = vmatprep.subr.bf16.mxu0 0
        %754 = vmatpush1.bf16.msra.mxu0 %v594
        %755 = vmatprep.mubr.bf16.mxu0 %v251
        %756 = vmatmul.mubr.bf16.gmra.mrb[0].mxu0 %v250
        %v757 = vpop.f32.mrb[0].mxu0
        %v758 = vadd.f32 %v718, %v757
        %v759 = vpop.f32.mrb[0].mxu0
        %v760 = vpop.f32.mrb[0].mxu0
        %v761 = vpop.f32.mrb[0].mxu0
        %762 = vdwg.mxu0
        %763 = vst [vmem:[%s201] sm:$0xff] %v758
        %s764 = sand.u32 %s97, 1
        %s765 = scalar_lea.sflag [#allocation4], %s764
        %s766 = sand.u32 %s97, 1
        %s767 = smul.addr %s766, 8
        %s768 = scalar_lea.vmem [#allocation7], %s767
        // Predicated region
        $region41: #{tpu_custom_call.1} parent=31 // pred_check
          %p769 = pneg %p107
        $region42: #{tpu_custom_call.1} parent=31 // pred_check_branch
          %771 = sbr.rel (%p769) target = $region44
        $region43: #{tpu_custom_call.1} parent=31 // pred_region
          %s773 = ssub.s32 128, 128
          %774 = vsyncadd %s765, %s773
          %s775 = smul.addr %s21, 128
          %s776 = scalar_lea.hbm %s3, %s775
          %s778 = sshll.u32 %s768, 4
          %s779 = int_to_ptr.vmem [resolvable:$true] %s778
          %781 = dma.vmem_to_hbm [thread:$0]  %s779, 128, %s776, %s765
        $region44: #{tpu_custom_call.1} parent=31 // pred_fallthru
          _
      $region32: #{tpu_custom_call.1} parent=5 // pred_fallthru
        _
      %p782 = scmp.le.s32.totalorder 2, %s16
      // Predicated region
      $region45: #{tpu_custom_call.1} parent=5 // pred_check
        %p783 = pneg %p782
      $region46: #{tpu_custom_call.1} parent=5 // pred_check_branch
        %785 = sbr.rel (%p783) target = $region48
      $region47: #{tpu_custom_call.1} parent=5 // pred_region
        %s786 = ssub.s32 %s16, 2
        // Predicated region
        $region49: #{tpu_custom_call.1} parent=47 // pred_check
          %p787 = pneg %p113
        $region50: #{tpu_custom_call.1} parent=47 // pred_check_branch
          %789 = sbr.rel (%p787) target = $region52
        $region51: #{tpu_custom_call.1} parent=47 // pred_region
          %s790 = sand.u32 %s98, 1
          %s791 = scalar_lea.sflag [#allocation4], %s790
          %s792 = sand.u32 %s98, 1
          %s793 = smul.addr %s792, 8
          %s794 = scalar_lea.vmem [#allocation7], %s793
          %795 = dma.done %s791, 128
        $region52: #{tpu_custom_call.1} parent=47 // pred_fallthru
          _
      $region48: #{tpu_custom_call.1} parent=5 // pred_fallthru
        _
    $region6: #{tpu_custom_call.1} parent=1 // loop_footer
      %s20 = sadd.s32 1, %s16
    $region7: #{tpu_custom_call.1} parent=1 // loop_footer_branch
      %15 = sbr.rel target = $region3
    $region8: #{tpu_custom_call.1} parent=1 // loop_exit
      _
    %796 = vsyncpa [#allocation3], 1
    %s797 = scalar_lea.sflag [#allocation3], 1
    %798 = vsyncpa %s797, 1
    %799 = vsyncpa [#allocation6], 1
    %800 = vsyncpa [#allocation4], 1
    %s801 = scalar_lea.sflag [#allocation4], 1
    %802 = vsyncpa %s801, 1

</llo_original>
